<compile_context>
chip_gen: v7x
topology: tpu7x:2x2x1
jax: 0.10.0
libtpu: 0.0.40
codegen_flags: <defaults>
</compile_context>

<pallas_src>
import math
from functools import lru_cache

import jax
import jax.numpy as jnp
from jax import lax
from jax.experimental import pallas as pl
from jax.experimental.pallas import tpu as pltpu

MLP_EMB_SIZE = [256, 512, 1024]


def round_emb(emb_size: int, arr) -> int:
    for candidate in arr:
        if candidate >= emb_size:
            return candidate
    return arr[-1]


def round_mlp_emb(emb_size: int) -> int:
    return round_emb(emb_size, MLP_EMB_SIZE)


@lru_cache(maxsize=1)
def _vmem_limit_bytes() -> int:
    """Generation-aware scoped-VMEM limit (128 MiB phys on v5e/v6e, 64 MiB on v7x)."""
    cap = 64 * 1024 * 1024
    try:
        cap = int(getattr(pltpu.get_tpu_info(), "vmem_capacity_bytes", cap))
    except Exception:
        pass
    return max(32 * 1024 * 1024, min(100 * 1024 * 1024, (3 * cap) // 4))


def _pick_tile(n: int, candidates=(512, 256, 128), min_steps: int = 2) -> int:
    """Largest row tile that still gives >= min_steps grid steps (feeds both
    v7x TensorCores); 256-multiples first (fills the 256-wide v6e/v7x MXU);
    full extent for tiny n.  Used with pl.cdiv grids so non-divisible extents
    just get a masked partial last tile."""
    for c in candidates:
        if n >= c * min_steps:
            return c
    return n


# ----------------------------- fused kernel ---------------------------------


def _fused_mlp_kernel(x_ref, w13p_ref, w2p_ref, z_ref):
    """One (batch b, hidden column-group c) step of the fused gated MLP.

    x_ref    : (1, S, E)   activations for batch b
    w13p_ref : (1, 2S, E)  bf16; rows 0..S-1  = W1[r*k + c, :]
                                 rows S..2S-1 = W3[r*k + c, :]
    w2p_ref  : (1, E, S)   bf16; W2[:, c*S:(c+1)*S]
    z_ref    : (1, S, E)   f32 accumulator for z[b] = y[b] @ W2^T
                           (y = RowLinear-prologue-scrambled gated activation)
    """
    c = pl.program_id(1)

    @pl.when(c == 0)
    def _():
        z_ref[...] = jnp.zeros_like(z_ref)

    x = x_ref[0].astype(jnp.bfloat16)                         # (S, E)
    w13 = w13p_ref[0]                                         # (2S, E)
    S = x.shape[0]
    # Gate/up projections for hidden rows {r*k + c : r < S}: one MXU pass,
    # NT form so the (out, in) weight layout is consumed un-transposed.
    hT = lax.dot_general(w13, x, (((1,), (1,)), ((), ())),
                         preferred_element_type=jnp.float32)  # (2S, S)
    h1 = hT[:S]                                               # rows r, cols t
    h3 = hT[S:]
    # SiLU gating in f32.  g[r, t] == y[b, r, c*S + t] of the scrambled input.
    g = (h1 * jax.nn.sigmoid(h1) * h3).astype(jnp.bfloat16)   # (S, S)
    # Down-projection contribution of this column group; f32 accumulation.
    z_ref[0] = z_ref[0] + lax.dot_general(
        g, w2p_ref[0], (((1,), (1,)), ((), ())),
        preferred_element_type=jnp.float32)                   # (S, E)


def _fused_forward(emb, w13p, w2p):
    B, S, E = emb.shape
    k = w13p.shape[0]
    H = k * S
    z = pl.pallas_call(
        _fused_mlp_kernel,
        out_shape=jax.ShapeDtypeStruct((B, S, E), jnp.float32),
        grid=(B, k),
        in_specs=[
            pl.BlockSpec((1, S, E), lambda b, c: (b, 0, 0)),       # x[b] (resident per batch)
            pl.BlockSpec((1, 2 * S, E), lambda b, c: (c, 0, 0)),   # streamed weight tiles
            pl.BlockSpec((1, E, S), lambda b, c: (c, 0, 0)),
        ],
        out_specs=pl.BlockSpec((1, S, E), lambda b, c: (b, 0, 0)),  # z[b] accumulator-resident
        compiler_params=pltpu.CompilerParams(
            dimension_semantics=("parallel", "arbitrary"),
            vmem_limit_bytes=_vmem_limit_bytes()),
        cost_estimate=pl.CostEstimate(
            flops=6 * B * S * E * H,
            transcendentals=B * S * H,
            bytes_accessed=B * (3 * H * E * 2 + S * E * emb.dtype.itemsize)
                           + B * S * E * 4),
    )(emb, w13p, w2p)
    # RowLinear epilogue: x.view(B, new_dim, -1).transpose(1, 2).
    # TODO(synk): folding this last permutation into the kernel needs a
    # minor-dim reshape + 3D transpose in VMEM that Mosaic does not lower
    # cleanly, so it stays one XLA transpose of the smallest tensor.
    return jnp.transpose(z.reshape(B, E, S), (0, 2, 1))


_fused_forward_jit = jax.jit(_fused_forward)


# ------------------------ fallback two-kernel path ---------------------------


def _gate_kernel(x_ref, w13_ref, g_ref):
    x = x_ref[0].astype(jnp.bfloat16)                         # (ts, E)
    h = lax.dot_general(x, w13_ref[...], (((1,), (1,)), ((), ())),
                        preferred_element_type=jnp.float32)   # (ts, 2H) lane-dense
    H = w13_ref.shape[0] // 2
    h1 = h[:, :H]
    h3 = h[:, H:]
    g_ref[0] = (h1 * jax.nn.sigmoid(h1) * h3).astype(g_ref.dtype)


def _down_kernel(y_ref, w2_ref, z_ref):
    y = y_ref[...].astype(jnp.bfloat16)                       # (tm, H)
    z_ref[...] = lax.dot_general(
        y, w2_ref[...], (((1,), (1,)), ((), ())),
        preferred_element_type=jnp.float32).astype(z_ref.dtype)


def _split_forward(emb, w13, w2):
    """Fallback when H % S != 0 (scramble not expressible as a weight
    permutation) or when per-batch fused tiles would not fit VMEM."""
    B, S, E = emb.shape
    H = w13.shape[0] // 2
    ts = _pick_tile(S)
    g = pl.pallas_call(
        _gate_kernel,
        out_shape=jax.ShapeDtypeStruct((B, S, H), jnp.bfloat16),  # bf16 halves HBM traffic
        grid=(B, pl.cdiv(S, ts)),
        in_specs=[
            pl.BlockSpec((1, ts, E), lambda b, s: (b, s, 0)),
            pl.BlockSpec((2 * H, E), lambda b, s: (0, 0)),        # weight resident
        ],
        out_specs=pl.BlockSpec((1, ts, H), lambda b, s: (b, s, 0)),
        compiler_params=pltpu.CompilerParams(
            dimension_semantics=("parallel", "parallel"),
            vmem_limit_bytes=_vmem_limit_bytes()),
    )(emb, w13)
    # RowLinear prologue: x.transpose(1,2).contiguous().view(B, S, H) (XLA relayout).
    y = jnp.transpose(g, (0, 2, 1)).reshape(B * S, H)
    M = B * S
    tm = _pick_tile(M)
    z = pl.pallas_call(
        _down_kernel,
        out_shape=jax.ShapeDtypeStruct((M, E), jnp.float32),
        grid=(pl.cdiv(M, tm),),
        in_specs=[
            pl.BlockSpec((tm, H), lambda i: (i, 0)),
            pl.BlockSpec((E, H), lambda i: (0, 0)),               # weight resident
        ],
        out_specs=pl.BlockSpec((tm, E), lambda i: (i, 0)),
        compiler_params=pltpu.CompilerParams(
            dimension_semantics=("parallel",),
            vmem_limit_bytes=_vmem_limit_bytes()),
    )(y, w2)
    # TODO(synk): add K-tiling (reduction grid axis over E / H + f32 accumulator)
    # here for production hidden sizes where resident weights exceed VMEM.
    return jnp.transpose(z.reshape(B, E, S), (0, 2, 1))


_split_forward_jit = jax.jit(_split_forward)


# ------------------------------ params & API --------------------------------


def prepare_params(w1, w2, w3, seq_len: int):
    """One-time (init) weight preparation for a fixed sequence length.

    Fused path: permute W1/W3 rows and W2 columns so the RowLinear prologue
    scramble becomes pure index_map bookkeeping; store everything bf16 for the
    MXU.  Layout is seq-length specific (recompute if S changes)."""
    H, E = w1.shape
    S = int(seq_len)
    wdt = jnp.bfloat16
    fused_step_bytes = 28 * S * E   # double-buffered x / w13p / w2p / z tiles
    if H % S == 0 and fused_step_bytes <= (3 * _vmem_limit_bytes()) // 4:
        k = H // S
        w1p = w1.reshape(S, k, E).transpose(1, 0, 2)              # [c, r] = W1[r*k + c]
        w3p = w3.reshape(S, k, E).transpose(1, 0, 2)
        w13p = jnp.concatenate([w1p, w3p], axis=1).astype(wdt)    # (k, 2S, E)
        w2p = w2.reshape(E, k, S).transpose(1, 0, 2).astype(wdt)  # (k, E, S)
        return {"mode": "fused", "w13p": w13p, "w2p": w2p}
    w13 = jnp.concatenate([w1, w3], axis=0).astype(wdt)           # (2H, E)
    return {"mode": "split", "w13": w13, "w2": w2.astype(wdt)}


def mlp_forward(emb, params):
    if params["mode"] == "fused":
        return _fused_forward_jit(emb, params["w13p"], params["w2p"])
    return _split_forward_jit(emb, params["w13"], params["w2"])


def mlp_reference(emb, w1, w2, w3):
    """Pure-JAX f32 reference mirroring the PyTorch module op-by-op."""
    B, S, E = emb.shape
    H = w1.shape[0]
    h1 = emb @ w1.T
    h3 = emb @ w3.T
    g = (h1 * jax.nn.sigmoid(h1)) * h3
    y = jnp.transpose(g, (0, 2, 1)).reshape(B, S, H)      # RowLinear prologue
    z = y @ w2.T
    return jnp.transpose(z.reshape(B, E, S), (0, 2, 1))   # RowLinear epilogue


# --------------------------------- main --------------------------------------

if __name__ == "__main__":
    emb_size = 128
    scale_ratio = 2
    hidden = round_mlp_emb(emb_size * scale_ratio)   # 256
    B, S = 2, 8

    key = jax.random.PRNGKey(0)
    k_emb, k1, k2, k3 = jax.random.split(key, 4)

    # PyTorch nn.Linear weight shapes: (out, in), no bias.
    bound1 = 1.0 / math.sqrt(emb_size)
    bound2 = 1.0 / math.sqrt(hidden)
    w1 = jax.random.uniform(k1, (hidden, emb_size), jnp.float32, -bound1, bound1)
    w3 = jax.random.uniform(k3, (hidden, emb_size), jnp.float32, -bound1, bound1)
    w2 = jax.random.uniform(k2, (emb_size, hidden), jnp.float32, -bound2, bound2)

    emb = jax.random.normal(k_emb, (B, S, emb_size), jnp.float32)

    # Init-time weight preparation (done once, not per forward call).
    params = prepare_params(w1, w2, w3, seq_len=S)

    out = jax.block_until_ready(mlp_forward(emb, params))

    ref = mlp_reference(emb, w1, w2, w3)
    assert out.shape == (B, S, emb_size)
    # bf16 weights/activations with f32 accumulation -> loosened tolerance.
    assert jnp.allclose(out, ref, atol=3e-2, rtol=3e-2), float(
        jnp.max(jnp.abs(out - ref)))

    print("KERNEL_OK")
</pallas_src>

<mosaic_0001>
module attributes {stable_mosaic.version = 11 : i64} {
  func.func @_fused_mlp_kernel(%arg0: i32, %arg1: i32, %arg2: memref<1x8x128xf32, #tpu.memory_space<vmem>>, %arg3: memref<1x16x128xbf16, #tpu.memory_space<vmem>>, %arg4: memref<1x128x8xbf16, #tpu.memory_space<vmem>>, %arg5: memref<1x8x128xf32, #tpu.memory_space<vmem>>) attributes {dimension_semantics = [#tpu.dimension_semantics<parallel>, #tpu.dimension_semantics<arbitrary>], iteration_bounds = array<i64: 2, 32>, scalar_prefetch = 0 : i64, scratch_operands = 0 : i64, tpu.core_type = #tpu.core_type<tc>, window_params = [{transform_indices = @transform_0, window_bounds = array<i64: 1, 8, 128>}, {transform_indices = @transform_1, window_bounds = array<i64: 1, 16, 128>}, {transform_indices = @transform_2, window_bounds = array<i64: 1, 128, 8>}, {transform_indices = @transform_3, window_bounds = array<i64: 1, 8, 128>}]} {
    %c0_i32 = arith.constant 0 : i32
    %0 = arith.cmpi eq, %arg1, %c0_i32 : i32
    %1 = arith.extui %0 : i1 to i32
    %c0_i32_0 = arith.constant 0 : i32
    %2 = arith.cmpi ne, %1, %c0_i32_0 : i32
    scf.if %2 {
      %cst_17 = arith.constant 0.000000e+00 : f32
      %28 = vector.broadcast %cst_17 : f32 to vector<1x8x128xf32>
      %c0_18 = arith.constant 0 : index
      %c0_19 = arith.constant 0 : index
      %c0_20 = arith.constant 0 : index
      %29 = vector.load %arg5[%c0_18, %c0_19, %c0_20] : memref<1x8x128xf32, #tpu.memory_space<vmem>>, vector<1x8x128xf32>
      tpu.vector_store %arg5[%c0_18, %c0_19, %c0_20], %28 {strides = array<i32>} : memref<1x8x128xf32, #tpu.memory_space<vmem>>, vector<1x8x128xf32>,
    } else {
    }
    %c0 = arith.constant 0 : index
    %c0_1 = arith.constant 0 : index
    %c0_2 = arith.constant 0 : index
    %3 = vector.load %arg2[%c0, %c0_1, %c0_2] : memref<1x8x128xf32, #tpu.memory_space<vmem>>, vector<1x8x128xf32>
    %4 = vector.shape_cast %3 : vector<1x8x128xf32> to vector<8x128xf32>
    %5 = arith.truncf %4 : vector<8x128xf32> to vector<8x128xbf16>
    %c0_3 = arith.constant 0 : index
    %c0_4 = arith.constant 0 : index
    %c0_5 = arith.constant 0 : index
    %6 = vector.load %arg3[%c0_3, %c0_4, %c0_5] : memref<1x16x128xbf16, #tpu.memory_space<vmem>>, vector<1x16x128xbf16>
    %7 = vector.shape_cast %6 : vector<1x16x128xbf16> to vector<16x128xbf16>
    %cst = arith.constant dense<0.000000e+00> : vector<16x8xf32>
    %8 = tpu.matmul %7, %5, %cst {dimension_numbers = #tpu.dot_dimension_numbers<[1], [1], [0], [0], [0, 0, 1, 0], [], []>} : vector<16x128xbf16>, vector<8x128xbf16>, vector<16x8xf32> -> vector<16x8xf32>
    %9 = vector.extract_strided_slice %8 {offsets = [0, 0], sizes = [8, 8], strides = [1, 1]} : vector<16x8xf32> to vector<8x8xf32>
    %10 = vector.extract_strided_slice %8 {offsets = [8, 0], sizes = [8, 8], strides = [1, 1]} : vector<16x8xf32> to vector<8x8xf32>
    %11 = arith.negf %9 : vector<8x8xf32>
    %12 = math.exp %11 : vector<8x8xf32>
    %cst_6 = arith.constant 1.000000e+00 : f32
    %13 = vector.broadcast %cst_6 : f32 to vector<8x8xf32>
    %14 = arith.addf %13, %12 : vector<8x8xf32>
    %15 = arith.divf %13, %14 : vector<8x8xf32>
    %16 = arith.mulf %9, %15 : vector<8x8xf32>
    %17 = arith.mulf %16, %10 : vector<8x8xf32>
    %18 = arith.truncf %17 : vector<8x8xf32> to vector<8x8xbf16>
    %c0_7 = arith.constant 0 : index
    %c0_8 = arith.constant 0 : index
    %c0_9 = arith.constant 0 : index
    %19 = vector.load %arg5[%c0_7, %c0_8, %c0_9] : memref<1x8x128xf32, #tpu.memory_space<vmem>>, vector<1x8x128xf32>
    %20 = vector.shape_cast %19 : vector<1x8x128xf32> to vector<8x128xf32>
    %c0_10 = arith.constant 0 : index
    %c0_11 = arith.constant 0 : index
    %c0_12 = arith.constant 0 : index
    %21 = vector.load %arg4[%c0_10, %c0_11, %c0_12] : memref<1x128x8xbf16, #tpu.memory_space<vmem>>, vector<1x128x8xbf16>
    %22 = vector.shape_cast %21 : vector<1x128x8xbf16> to vector<128x8xbf16>
    %cst_13 = arith.constant dense<0.000000e+00> : vector<8x128xf32>
    %23 = tpu.matmul %18, %22, %cst_13 {dimension_numbers = #tpu.dot_dimension_numbers<[1], [1], [0], [0], [0, 0, 1, 0], [], []>} : vector<8x8xbf16>, vector<128x8xbf16>, vector<8x128xf32> -> vector<8x128xf32>
    %24 = arith.addf %20, %23 : vector<8x128xf32>
    %c0_14 = arith.constant 0 : index
    %c0_15 = arith.constant 0 : index
    %c0_16 = arith.constant 0 : index
    %25 = vector.load %arg5[%c0_14, %c0_15, %c0_16] : memref<1x8x128xf32, #tpu.memory_space<vmem>>, vector<1x8x128xf32>
    %26 = vector.shape_cast %25 : vector<1x8x128xf32> to vector<8x128xf32>
    %27 = vector.shape_cast %24 : vector<8x128xf32> to vector<1x8x128xf32>
    tpu.vector_store %arg5[%c0_14, %c0_15, %c0_16], %27 {strides = array<i32>} : memref<1x8x128xf32, #tpu.memory_space<vmem>>, vector<1x8x128xf32>,
    return
  }
  func.func @transform_0(%arg0: i32, %arg1: i32) -> (i32, i32, i32) {
    %c0_i32 = arith.constant 0 : i32
    %c0_i32_0 = arith.constant 0 : i32
    %c0_i32_1 = arith.constant 0 : i32
    return %arg0, %c0_i32, %c0_i32_0 : i32, i32, i32
  }
  func.func @transform_1(%arg0: i32, %arg1: i32) -> (i32, i32, i32) {
    %c0_i32 = arith.constant 0 : i32
    %c0_i32_0 = arith.constant 0 : i32
    %c0_i32_1 = arith.constant 0 : i32
    return %arg1, %c0_i32, %c0_i32_0 : i32, i32, i32
  }
  func.func @transform_2(%arg0: i32, %arg1: i32) -> (i32, i32, i32) {
    %c0_i32 = arith.constant 0 : i32
    %c0_i32_0 = arith.constant 0 : i32
    %c0_i32_1 = arith.constant 0 : i32
    return %arg1, %c0_i32, %c0_i32_0 : i32, i32, i32
  }
  func.func @transform_3(%arg0: i32, %arg1: i32) -> (i32, i32, i32) {
    %c0_i32 = arith.constant 0 : i32
    %c0_i32_0 = arith.constant 0 : i32
    %c0_i32_1 = arith.constant 0 : i32
    return %arg0, %c0_i32, %c0_i32_0 : i32, i32, i32
  }
}

</mosaic_0001>

<llo_original>
// kernel: _fused_forward.1
$region0: #{_fused_forward.1}
  #allocation0 [shape = 'u32[]', space=smem, size = 0x4, offset = 0x4, fixed_abs, tag = 'smem constant byte address 0x4 - core index']
  #allocation1 [shape = 'u32[144,128]{1,0:T(1,128)}', space=vmem, size = 0x12000, scoped, tag = 'internal scratch']
  %s0 = inlined_call_operand.vmem [shape: f32[2,8,128], index: 0, kind: input, shape index: {}]
  %s1 = inlined_call_operand.vmem [shape: bf16[32,16,128], index: 1, kind: input, shape index: {}]
  %s2 = inlined_call_operand.vmem [shape: bf16[32,128,8], index: 2, kind: input, shape index: {}]
  %s3 = inlined_call_operand.vmem [shape: f32[2,8,128], index: 3, kind: output, shape index: {}]
  %s4 = sld [smem:[#allocation0]]
  $region49: #{_fused_forward.1} parent=0
    _
  %s6 = ssub.s32 1, %s4
  %s7 = scalar_select 0, %s6, %s4
  loop: start=0, step=1, limit=66
  $region2: #{_fused_forward.1} parent=0 // loop_pre_header
    _
  $region3: #{_fused_forward.1} parent=0 // loop_header
    %s9 = sphi 0, %s13
    %p10 = scmp.ge.s32.totalorder %s9, 66
    %s16 = sphi 0, %s28
    %s17 = sphi 0, %s24
    %s18 = sphi 0, %s16
    %s19 = sphi 0, %s17
    %s20 = sphi 0, %s18
    %s21 = sphi 0, %s19
    %s31 = sphi 0, %s33
    %s34 = sphi 0, %s31
    %s35 = sphi 0, %s34
    %s51 = sphi 0, %s35
    %s57 = sphi 0, %s59
    %s60 = sphi 0, %s57
    %s61 = sphi 0, %s60
    %s77 = sphi 0, %s61
    %s83 = sphi 0, %s85
    %s86 = sphi 0, %s83
    %s87 = sphi 0, %s86
    %s103 = sphi 0, %s87
    %s109 = sphi 0, %s111
    %s112 = sphi 0, %s109
    %s113 = sphi 0, %s112
    %s129 = sphi 0, %s113
  $region4: #{_fused_forward.1} parent=0 // loop_header_branch
    %12 = sbr.rel (%p10) target = $region8
  $region5: #{_fused_forward.1} parent=0 // loop_body
    %s14 = ssub.s32 %s9, 1
    %s15 = ssub.s32 %s9, 2
    %s22 = sadd.s32 1, %s17
    %p23 = scmp.ge.s32.totalorder %s22, 32
    %s24 = scalar_select %p23, 0, %s22
    %s25 = sadd.s32 1, %s16
    %s26 = scalar_select %p23, %s25, %s16
    %p27 = scmp.ge.s32.totalorder %s26, 2
    %s28 = scalar_select %p27, 0, %s26
    %s29 = ssub.s32 %s16, %s28
    %p30 = scmp.eq.s32.totalorder %s29, 0
    %s32 = sadd.s32 %s31, 1
    %s33 = scalar_select %p30, %s31, %s32
    %p36 = pneg %p30
    %p37 = scmp.eq.s32.totalorder %s9, 63
    %p38 = por %p36, %p37
    %p39 = scmp.ne.s32.totalorder %s31, %s34
    %p40 = scmp.eq.s32.totalorder %s9, 0
    %p41 = por %p39, %p40
    %p42 = scmp.ne.s32.totalorder %s31, %s34
    %p43 = scmp.eq.s32.totalorder %s14, 63
    %p44 = por %p42, %p43
    %p45 = scmp.ne.s32.totalorder %s34, %s35
    %p46 = scmp.eq.s32.totalorder %s14, 0
    %p47 = por %p45, %p46
    %p48 = scmp.ne.s32.totalorder %s34, %s35
    %p49 = scmp.eq.s32.totalorder %s15, 63
    %p50 = por %p48, %p49
    %p52 = scmp.ne.s32.totalorder %s35, %s51
    %p53 = scmp.eq.s32.totalorder %s15, 0
    %p54 = por %p52, %p53
    %s55 = ssub.s32 %s17, %s24
    %p56 = scmp.eq.s32.totalorder %s55, 0
    %s58 = sadd.s32 %s57, 1
    %s59 = scalar_select %p56, %s57, %s58
    %p62 = pneg %p56
    %p63 = scmp.eq.s32.totalorder %s9, 63
    %p64 = por %p62, %p63
    %p65 = scmp.ne.s32.totalorder %s57, %s60
    %p66 = scmp.eq.s32.totalorder %s9, 0
    %p67 = por %p65, %p66
    %p68 = scmp.ne.s32.totalorder %s57, %s60
    %p69 = scmp.eq.s32.totalorder %s14, 63
    %p70 = por %p68, %p69
    %p71 = scmp.ne.s32.totalorder %s60, %s61
    %p72 = scmp.eq.s32.totalorder %s14, 0
    %p73 = por %p71, %p72
    %p74 = scmp.ne.s32.totalorder %s60, %s61
    %p75 = scmp.eq.s32.totalorder %s15, 63
    %p76 = por %p74, %p75
    %p78 = scmp.ne.s32.totalorder %s61, %s77
    %p79 = scmp.eq.s32.totalorder %s15, 0
    %p80 = por %p78, %p79
    %s81 = ssub.s32 %s17, %s24
    %p82 = scmp.eq.s32.totalorder %s81, 0
    %s84 = sadd.s32 %s83, 1
    %s85 = scalar_select %p82, %s83, %s84
    %p88 = pneg %p82
    %p89 = scmp.eq.s32.totalorder %s9, 63
    %p90 = por %p88, %p89
    %p91 = scmp.ne.s32.totalorder %s83, %s86
    %p92 = scmp.eq.s32.totalorder %s9, 0
    %p93 = por %p91, %p92
    %p94 = scmp.ne.s32.totalorder %s83, %s86
    %p95 = scmp.eq.s32.totalorder %s14, 63
    %p96 = por %p94, %p95
    %p97 = scmp.ne.s32.totalorder %s86, %s87
    %p98 = scmp.eq.s32.totalorder %s14, 0
    %p99 = por %p97, %p98
    %p100 = scmp.ne.s32.totalorder %s86, %s87
    %p101 = scmp.eq.s32.totalorder %s15, 63
    %p102 = por %p100, %p101
    %p104 = scmp.ne.s32.totalorder %s87, %s103
    %p105 = scmp.eq.s32.totalorder %s15, 0
    %p106 = por %p104, %p105
    %s107 = ssub.s32 %s16, %s28
    %p108 = scmp.eq.s32.totalorder %s107, 0
    %s110 = sadd.s32 %s109, 1
    %s111 = scalar_select %p108, %s109, %s110
    %p114 = pneg %p108
    %p115 = scmp.eq.s32.totalorder %s9, 63
    %p116 = por %p114, %p115
    %p117 = scmp.ne.s32.totalorder %s109, %s112
    %p118 = scmp.eq.s32.totalorder %s9, 0
    %p119 = por %p117, %p118
    %p120 = scmp.ne.s32.totalorder %s109, %s112
    %p121 = scmp.eq.s32.totalorder %s14, 63
    %p122 = por %p120, %p121
    %p123 = scmp.ne.s32.totalorder %s112, %s113
    %p124 = scmp.eq.s32.totalorder %s14, 0
    %p125 = por %p123, %p124
    %p126 = scmp.ne.s32.totalorder %s112, %s113
    %p127 = scmp.eq.s32.totalorder %s15, 63
    %p128 = por %p126, %p127
    %p130 = scmp.ne.s32.totalorder %s113, %s129
    %p131 = scmp.eq.s32.totalorder %s15, 0
    %p132 = por %p130, %p131
    %p133 = scmp.le.s32.totalorder 1, %s9
    %p134 = scmp.lt.s32.totalorder %s9, 65
    %p135 = pnand %p133, %p134
    %p136 = pneg %p135
    // Predicated region
    $region9: #{_fused_forward.1} parent=5 // pred_check
      _
    $region10: #{_fused_forward.1} parent=5 // pred_check_branch
      %138 = sbr.rel (%p135) target = $region12
    $region11: #{_fused_forward.1} parent=5 // pred_region
      %s139 = ssub.s32 %s9, 1
    $region12: #{_fused_forward.1} parent=5 // pred_fallthru
      _
    %p140 = scmp.lt.s32.totalorder %s9, 64
    // Predicated region
    $region13: #{_fused_forward.1} parent=5 // pred_check
      %p141 = pneg %p140
    $region14: #{_fused_forward.1} parent=5 // pred_check_branch
      %143 = sbr.rel (%p141) target = $region16
    $region15: #{_fused_forward.1} parent=5 // pred_region
      // Predicated region
      $region17: #{_fused_forward.1} parent=15 // pred_check
        %p144 = pneg %p41
      $region18: #{_fused_forward.1} parent=15 // pred_check_branch
        %146 = sbr.rel (%p144) target = $region20
      $region19: #{_fused_forward.1} parent=15 // pred_region
        %p147 = scmp.lt.s32.totalorder %s16, 1
        %s148 = scalar_select %p147, %s16, 1
        %s149 = smul.addr %s148, 8
        %s150 = scalar_lea.vmem %s0, %s149
      $region20: #{_fused_forward.1} parent=15 // pred_fallthru
        _
      // Predicated region
      $region21: #{_fused_forward.1} parent=15 // pred_check
        %p151 = pneg %p67
      $region22: #{_fused_forward.1} parent=15 // pred_check_branch
        %153 = sbr.rel (%p151) target = $region24
      $region23: #{_fused_forward.1} parent=15 // pred_region
        %p154 = scmp.lt.s32.totalorder %s17, 31
        %s155 = scalar_select %p154, %s17, 31
        %s156 = smul.addr %s155, 2
        %s157 = smul.addr %s156, 4
        %s158 = scalar_lea.vmem %s1, %s157
      $region24: #{_fused_forward.1} parent=15 // pred_fallthru
        _
      // Predicated region
      $region25: #{_fused_forward.1} parent=15 // pred_check
        %p159 = pneg %p93
      $region26: #{_fused_forward.1} parent=15 // pred_check_branch
        %161 = sbr.rel (%p159) target = $region28
      $region27: #{_fused_forward.1} parent=15 // pred_region
        %p162 = scmp.lt.s32.totalorder %s17, 31
        %s163 = scalar_select %p162, %s17, 31
        %s164 = smul.addr %s163, 16
        %s165 = smul.addr %s164, 4
        %s166 = scalar_lea.vmem %s2, %s165
      $region28: #{_fused_forward.1} parent=15 // pred_fallthru
        _
    $region16: #{_fused_forward.1} parent=5 // pred_fallthru
      _
    %p167 = scmp.le.s32.totalorder 1, %s9
    %p168 = scmp.lt.s32.totalorder %s9, 65
    %p169 = pnand %p167, %p168
    %p170 = pneg %p169
    // Predicated region
    $region29: #{_fused_forward.1} parent=5 // pred_check
      _
    $region30: #{_fused_forward.1} parent=5 // pred_check_branch
      %172 = sbr.rel (%p169) target = $region32
    $region31: #{_fused_forward.1} parent=5 // pred_region
      %s173 = ssub.s32 %s9, 1
      %p174 = scmp.lt.s32.totalorder %s18, 1
      %s175 = scalar_select %p174, %s18, 1
      %s176 = smul.addr %s175, 8
      %s177 = scalar_lea.vmem %s0, %s176
      %p178 = pneg %p47
      %p179 = pneg %p44
      %p180 = scmp.lt.s32.totalorder %s19, 31
      %s181 = scalar_select %p180, %s19, 31
      %s182 = smul.addr %s181, 2
      %s183 = smul.addr %s182, 4
      %s184 = scalar_lea.vmem %s1, %s183
      %p185 = pneg %p73
      %p186 = pneg %p70
      %p187 = scmp.lt.s32.totalorder %s19, 31
      %s188 = scalar_select %p187, %s19, 31
      %s189 = smul.addr %s188, 16
      %s190 = smul.addr %s189, 4
      %s191 = scalar_lea.vmem %s2, %s190
      %p192 = pneg %p99
      %p193 = pneg %p96
      %p194 = pneg %p125
      %p195 = pneg %p122
      %p196 = scmp.lt.s32.totalorder %s18, 1
      %s197 = scalar_select %p196, %s18, 1
      %s198 = smul.addr %s197, 8
      %s199 = scalar_lea.vmem %s3, %s198
      %p200 = scmp.lt.s32.totalorder %s18, 1
      %s201 = scalar_select %p200, %s18, 1
      %s202 = smul.addr %s201, 8
      %s203 = scalar_lea.vmem %s0, %s202
      %p204 = scmp.lt.s32.totalorder %s19, 31
      %s205 = scalar_select %p204, %s19, 31
      %s206 = smul.addr %s205, 2
      %s207 = smul.addr %s206, 4
      %s208 = scalar_lea.vmem %s1, %s207
      %p209 = scmp.lt.s32.totalorder %s19, 31
      %s210 = scalar_select %p209, %s19, 31
      %s211 = smul.addr %s210, 16
      %s212 = smul.addr %s211, 4
      %s213 = scalar_lea.vmem %s2, %s212
      %p214 = scmp.lt.s32.totalorder %s18, 1
      %s215 = scalar_select %p214, %s18, 1
      %s216 = smul.addr %s215, 8
      %s217 = scalar_lea.vmem %s3, %s216
      %p219 = scmp.eq.s32.totalorder %s19, 0
      // Predicated region
      $region33: #{_fused_forward.1} parent=31 // pred_check
        %p220 = pneg %p219
      $region34: #{_fused_forward.1} parent=31 // pred_check_branch
        %222 = sbr.rel (%p220) target = $region36
      $region35: #{_fused_forward.1} parent=31 // pred_region
        %223 = vst [vmem:[%s217] sm:$0xff] 0.0
      $region36: #{_fused_forward.1} parent=31 // pred_fallthru
        _
      %v224 = vld [vmem:[%s203] sm:$0xff]
      %v225 = vpack.c.bf16 %v224, %v224
      %v226 = vld [vmem:[%s208] sm:$0xf]
      %v227 = vld [vmem:[%s208 + $0x4] sm:$0xf]
      %v230 = vunpack.c.l.b16 %v226
      %v231 = vunpack.c.l.b16 %v227
      %v232 = vpack.c.b16 %v231, %v230
      %234 = vmatprep.subr.bf16.mxu0 0
      %235 = vmatpush1.bf16.xpose.msra.mxu0 %v225
      %236 = vmatprep.subr.bf16.mxu0 0
      %237 = vmatpush1.bf16.xpose.msra.mxu0 0
      %238 = vmatprep.subr.bf16.mxu0 0
      %239 = vmatpush1.bf16.xpose.msra.mxu0 0
      %240 = vmatprep.subr.bf16.mxu0 0
      %241 = vmatpush1.bf16.xpose.msra.mxu0 0
      %242 = vmatprep.subr.bf16.mxu0 0
      %243 = vmatpush1.bf16.xpose.msra.mxu0 0
      %244 = vmatprep.subr.bf16.mxu0 0
      %245 = vmatpush1.bf16.xpose.msra.mxu0 0
      %246 = vmatprep.subr.bf16.mxu0 0
      %247 = vmatpush1.bf16.xpose.msra.mxu0 0
      %248 = vmatprep.subr.bf16.mxu0 0
      %249 = vmatpush1.bf16.xpose.msra.mxu0 0
      %250 = vmatprep.subr.bf16.mxu0 0
      %251 = vmatpush1.bf16.xpose.msra.mxu0 0
      %252 = vmatprep.subr.bf16.mxu0 0
      %253 = vmatpush1.bf16.xpose.msra.mxu0 0
      %254 = vmatprep.subr.bf16.mxu0 0
      %255 = vmatpush1.bf16.xpose.msra.mxu0 0
      %256 = vmatprep.subr.bf16.mxu0 0
      %257 = vmatpush1.bf16.xpose.msra.mxu0 0
      %258 = vmatprep.subr.bf16.mxu0 0
      %259 = vmatpush1.bf16.xpose.msra.mxu0 0
      %260 = vmatprep.subr.bf16.mxu0 0
      %261 = vmatpush1.bf16.xpose.msra.mxu0 0
      %262 = vmatprep.subr.bf16.mxu0 0
      %263 = vmatpush1.bf16.xpose.msra.mxu0 0
      %264 = vmatprep.subr.bf16.mxu0 0
      %265 = vmatpush1.bf16.xpose.msra.mxu0 0
      %266 = vmatprep.mubr.bf16.mxu0 0
      %267 = vmatmul.mubr.bf16.gmra.mrb[0].mxu0 %v232
      %v268 = vpop.f32.mrb[0].mxu0
      %v269 = vadd.f32 0.0, %v268
      %v270 = vpop.f32.mrb[0].mxu0
      %v271 = vpop.f32.mrb[0].mxu0
      %v272 = vadd.f32 0.0, %v271
      %v273 = vpop.f32.mrb[0].mxu0
      %274 = vdwg.mxu0
      %v275 = vxor.u32 %v269, 2147483648
      %v276 = vmul.f32 %v275, 1.442695
      %v277 = vpow.pop %v276
      %v278 = vadd.f32 %v277, 1.0
      %v279 = vrcp.pop %v278
      %v280 = vmul.f32 1.0, %v279
      %v281 = vmul.f32 %v269, %v280
      %v282 = vmul.f32 %v281, %v272
      %v283 = vpack.c.bf16 %v282, %v282
      %v284 = vld [vmem:[%s217] sm:$0xff]
      %v285 = vld [vmem:[%s213] sm:$0xf]
      %v286 = vld [vmem:[%s213 + $0x4] sm:$0xf]
      %v287 = vld [vmem:[%s213 + $0x8] sm:$0xf]
      %v288 = vld [vmem:[%s213 + $0xc] sm:$0xf]
      %v289 = vld [vmem:[%s213 + $0x10] sm:$0xf]
      %v290 = vld [vmem:[%s213 + $0x14] sm:$0xf]
      %v291 = vld [vmem:[%s213 + $0x18] sm:$0xf]
      %v292 = vld [vmem:[%s213 + $0x1c] sm:$0xf]
      %v293 = vld [vmem:[%s213 + $0x20] sm:$0xf]
      %v294 = vld [vmem:[%s213 + $0x24] sm:$0xf]
      %v295 = vld [vmem:[%s213 + $0x28] sm:$0xf]
      %v296 = vld [vmem:[%s213 + $0x2c] sm:$0xf]
      %v297 = vld [vmem:[%s213 + $0x30] sm:$0xf]
      %v298 = vld [vmem:[%s213 + $0x34] sm:$0xf]
      %v299 = vld [vmem:[%s213 + $0x38] sm:$0xf]
      %v300 = vld [vmem:[%s213 + $0x3c] sm:$0xf]
      %v317 = vunpack.c.l.b16 %v285
      %v318 = vunpack.c.l.b16 %v286
      %v319 = vunpack.c.l.b16 %v287
      %v320 = vunpack.c.l.b16 %v288
      %v321 = vunpack.c.l.b16 %v289
      %v322 = vunpack.c.l.b16 %v290
      %v323 = vunpack.c.l.b16 %v291
      %v324 = vunpack.c.l.b16 %v292
      %v325 = vunpack.c.l.b16 %v293
      %v326 = vunpack.c.l.b16 %v294
      %v327 = vunpack.c.l.b16 %v295
      %v328 = vunpack.c.l.b16 %v296
      %v329 = vunpack.c.l.b16 %v297
      %v330 = vunpack.c.l.b16 %v298
      %v331 = vunpack.c.l.b16 %v299
      %v332 = vunpack.c.l.b16 %v300
      %v333 = vpack.c.b16 %v318, %v317
      %v334 = vpack.c.b16 %v320, %v319
      %v335 = vpack.c.b16 %v322, %v321
      %v336 = vpack.c.b16 %v324, %v323
      %v337 = vpack.c.b16 %v326, %v325
      %v338 = vpack.c.b16 %v328, %v327
      %v339 = vpack.c.b16 %v330, %v329
      %v340 = vpack.c.b16 %v332, %v331
      %vm341 = vcmask 64512
      %v343 = vsel %vm341, %v283, 0
      %v346 = vsel %vm341, %v333, 0
      %v349 = vsel %vm341, %v334, 0
      %v352 = vsel %vm341, %v335, 0
      %v355 = vsel %vm341, %v336, 0
      %v358 = vsel %vm341, %v337, 0
      %v361 = vsel %vm341, %v338, 0
      %v364 = vsel %vm341, %v339, 0
      %v367 = vsel %vm341, %v340, 0
      %369 = vmatprep.subr.bf16.mxu0 0
      %370 = vmatpush1.bf16.xpose.msra.mxu0 %v346
      %371 = vmatprep.subr.bf16.mxu0 0
      %372 = vmatpush1.bf16.xpose.msra.mxu0 %v349
      %373 = vmatprep.subr.bf16.mxu0 0
      %374 = vmatpush1.bf16.xpose.msra.mxu0 %v352
      %375 = vmatprep.subr.bf16.mxu0 0
      %376 = vmatpush1.bf16.xpose.msra.mxu0 %v355
      %377 = vmatprep.subr.bf16.mxu0 0
      %378 = vmatpush1.bf16.xpose.msra.mxu0 %v358
      %379 = vmatprep.subr.bf16.mxu0 0
      %380 = vmatpush1.bf16.xpose.msra.mxu0 %v361
      %381 = vmatprep.subr.bf16.mxu0 0
      %382 = vmatpush1.bf16.xpose.msra.mxu0 %v364
      %383 = vmatprep.subr.bf16.mxu0 0
      %384 = vmatpush1.bf16.xpose.msra.mxu0 %v367
      %385 = vmatprep.subr.bf16.mxu0 0
      %386 = vmatpush1.bf16.xpose.msra.mxu0 0
      %387 = vmatprep.subr.bf16.mxu0 0
      %388 = vmatpush1.bf16.xpose.msra.mxu0 0
      %389 = vmatprep.subr.bf16.mxu0 0
      %390 = vmatpush1.bf16.xpose.msra.mxu0 0
      %391 = vmatprep.subr.bf16.mxu0 0
      %392 = vmatpush1.bf16.xpose.msra.mxu0 0
      %393 = vmatprep.subr.bf16.mxu0 0
      %394 = vmatpush1.bf16.xpose.msra.mxu0 0
      %395 = vmatprep.subr.bf16.mxu0 0
      %396 = vmatpush1.bf16.xpose.msra.mxu0 0
      %397 = vmatprep.subr.bf16.mxu0 0
      %398 = vmatpush1.bf16.xpose.msra.mxu0 0
      %399 = vmatprep.subr.bf16.mxu0 0
      %400 = vmatpush1.bf16.xpose.msra.mxu0 0
      %401 = vmatprep.mubr.bf16.mxu0 0
      %402 = vmatmul.mubr.bf16.gmra.mrb[0].mxu0 %v343
      %v403 = vpop.f32.mrb[0].mxu0
      %v404 = vadd.f32 0.0, %v403
      %v405 = vpop.f32.mrb[0].mxu0
      %v406 = vpop.f32.mrb[0].mxu0
      %v407 = vpop.f32.mrb[0].mxu0
      %408 = vdwg.mxu0
      %v409 = vadd.f32 %v284, %v404
      %410 = vst [vmem:[%s217] sm:$0xff] %v409
      %p411 = scmp.lt.s32.totalorder %s18, 1
      %s412 = scalar_select %p411, %s18, 1
      %s413 = smul.addr %s412, 8
      %s414 = scalar_lea.vmem %s3, %s413
      // Predicated region
      $region37: #{_fused_forward.1} parent=31 // pred_check
        %p415 = pneg %p122
      $region38: #{_fused_forward.1} parent=31 // pred_check_branch
        %417 = sbr.rel (%p415) target = $region40
      $region39: #{_fused_forward.1} parent=31 // pred_region
        _
      $region40: #{_fused_forward.1} parent=31 // pred_fallthru
        _
    $region32: #{_fused_forward.1} parent=5 // pred_fallthru
      _
    %p418 = scmp.le.s32.totalorder 2, %s9
    // Predicated region
    $region41: #{_fused_forward.1} parent=5 // pred_check
      %p419 = pneg %p418
    $region42: #{_fused_forward.1} parent=5 // pred_check_branch
      %421 = sbr.rel (%p419) target = $region44
    $region43: #{_fused_forward.1} parent=5 // pred_region
      %s422 = ssub.s32 %s9, 2
      // Predicated region
      $region45: #{_fused_forward.1} parent=43 // pred_check
        %p423 = pneg %p128
      $region46: #{_fused_forward.1} parent=43 // pred_check_branch
        %425 = sbr.rel (%p423) target = $region48
      $region47: #{_fused_forward.1} parent=43 // pred_region
        %p426 = scmp.lt.s32.totalorder %s20, 1
        %s427 = scalar_select %p426, %s20, 1
        %s428 = smul.addr %s427, 8
        %s429 = scalar_lea.vmem %s3, %s428
      $region48: #{_fused_forward.1} parent=43 // pred_fallthru
        _
    $region44: #{_fused_forward.1} parent=5 // pred_fallthru
      _
  $region6: #{_fused_forward.1} parent=0 // loop_footer
    %s13 = sadd.s32 1, %s9
  $region7: #{_fused_forward.1} parent=0 // loop_footer_branch
    %8 = sbr.rel target = $region3
  $region8: #{_fused_forward.1} parent=0 // loop_exit
    _

</llo_original>
